<compile_context>
chip_gen: v7x
topology: tpu7x:2x2x1
jax: 0.10.0
libtpu: 0.0.40
codegen_flags: <defaults>
</compile_context>

<pallas_src>
import functools

import jax
import jax.numpy as jnp
from jax.experimental import pallas as pl
from jax.experimental.pallas import tpu as pltpu

_MIB = 1024 * 1024


# ----------------------------- Pallas kernel --------------------------------

def _mlp_kernel(x_ref, w1_ref, b1_ref, w2_ref, b2_ref, w3_ref, b3_ref, o_ref):
    """3-layer MLP: bf16 matmuls on the MXU, f32 accumulation, f32 epilogue."""
    h = jnp.dot(x_ref[...], w1_ref[...], preferred_element_type=jnp.float32)
    h = jnp.maximum(h + b1_ref[...], 0.0)                     # Linear + ReLU
    h = jnp.dot(h.astype(jnp.bfloat16), w2_ref[...],
                preferred_element_type=jnp.float32)
    h = jnp.maximum(h + b2_ref[...], 0.0)                     # Linear + ReLU
    h = jnp.dot(h.astype(jnp.bfloat16), w3_ref[...],
                preferred_element_type=jnp.float32)
    o_ref[...] = (h + b3_ref[...]).astype(o_ref.dtype)        # final Linear
    # TODO(synk): dropout is identity at inference, so it is intentionally omitted.


# --------------------------- one-time param prep -----------------------------

def prepare_params(params):
    """One-time prep (call once; keep results resident on device).

    Weights -> bf16 MXU operands; biases -> f32 (1, H) rows for the VPU epilogue.
    No zero-row fold: the channel slice is done upstream of the kernel so the
    activation DMA carries only the T*(state_dim+control_dim) features.
    """
    w1, b1, w2, b2, w3, b3 = params
    return (
        w1.astype(jnp.bfloat16), b1.reshape(1, -1).astype(jnp.float32),
        w2.astype(jnp.bfloat16), b2.reshape(1, -1).astype(jnp.float32),
        w3.astype(jnp.bfloat16), b3.reshape(1, -1).astype(jnp.float32),
    )


# ------------------------- tile / VMEM planning -------------------------------

def _vmem_capacity_bytes():
    try:
        return int(pltpu.get_tpu_info().vmem_capacity_bytes)
    except Exception:
        return 64 * _MIB            # conservative default (v7x per-TensorCore)


def _round_up(x, m):
    return ((x + m - 1) // m) * m


def _plan_tiles(batch, d_in, out_dim, weight_bytes):
    """Pick the batch (M) tile and the scoped-VMEM limit for this generation."""
    vmem_cap = _vmem_capacity_bytes()
    # v5e/v6e: 128 MiB VMEM, single TensorCore -> big 512-row tiles (closer to
    # HBM roofline).  v7x: 64 MiB, 2 TCs -> 256-row tiles so large batches
    # shard across both cores via the "parallel" grid axis.
    tb = 512 if vmem_cap >= 96 * _MIB else 256
    usable = int(vmem_cap * 0.7)    # headroom for Mosaic internal scratch

    def bytes_needed(t):
        act = 2 * t * d_in * 2      # double-buffered bf16 activation tiles
        out = 2 * t * out_dim * 4   # double-buffered f32 output tiles
        return act + out + 2 * weight_bytes   # resident weights/biases

    while tb > 8 and bytes_needed(tb) > usable:
        tb //= 2                    # shrink only the M/batch dim, never lanes
    tb = min(tb, _round_up(batch, 8))          # tiny batches: one small block
    vmem_limit = min(vmem_cap, max(bytes_needed(tb) + 4 * _MIB, 32 * _MIB))
    return tb, int(vmem_limit)


# ------------------------------- forward pass --------------------------------

@functools.partial(jax.jit, static_argnames=("state_dim", "control_dim"))
def mlp_time_embed_encoder(x, prepped_params, *, state_dim, control_dim):
    """x: (B, history_len+1, feature_dim) f32 -> (B, 1, output_dim) f32."""
    w1p, b1p, w2p, b2p, w3p, b3p = prepped_params
    B, T, _F = x.shape
    sc = state_dim + control_dim
    d_in = T * sc
    h1, h2, out_dim = w1p.shape[1], w2p.shape[1], w3p.shape[1]
    assert w1p.shape[0] == d_in, (w1p.shape, d_in)

    # Channel slice + row-major flatten + bf16 cast: one fused XLA pass that
    # allow_input_fusion can fold into the Pallas input DMA.  This halves the
    # dominant f32 activation HBM stream and avoids the old W1 zero-row
    # inflation of the K dim.
    x2d = x[:, :, :sc].reshape(B, d_in).astype(jnp.bfloat16)

    weight_bytes = sum(int(a.size) * a.dtype.itemsize
                       for a in (w1p, b1p, w2p, b2p, w3p, b3p))
    tb, vmem_limit = _plan_tiles(B, d_in, out_dim, weight_bytes)
    grid = (pl.cdiv(B, tb),)        # partial last block handled by Pallas masking

    flops = 2 * B * (d_in * h1 + h1 * h2 + h2 * out_dim)
    bytes_accessed = B * d_in * 2 + B * out_dim * 4 + weight_bytes

    out = pl.pallas_call(
        _mlp_kernel,
        out_shape=jax.ShapeDtypeStruct((B, out_dim), jnp.float32),
        grid=grid,
        in_specs=[
            pl.BlockSpec((tb, d_in), lambda i: (i, 0)),   # activations: row-tiled
            pl.BlockSpec(w1p.shape, lambda i: (0, 0)),    # weights/biases resident
            pl.BlockSpec(b1p.shape, lambda i: (0, 0)),
            pl.BlockSpec(w2p.shape, lambda i: (0, 0)),
            pl.BlockSpec(b2p.shape, lambda i: (0, 0)),
            pl.BlockSpec(w3p.shape, lambda i: (0, 0)),
            pl.BlockSpec(b3p.shape, lambda i: (0, 0)),
        ],
        # TODO(synk): for very wide hidden layers, single-buffer the six invariant
        # weight/bias specs (pipeline_mode=pl.Buffered(1)) to halve their VMEM;
        # at 32-wide hiddens it changes nothing so it is left at the default.
        out_specs=pl.BlockSpec((tb, out_dim), lambda i: (i, 0)),
        compiler_params=pltpu.CompilerParams(
            dimension_semantics=("parallel",),
            vmem_limit_bytes=vmem_limit,
            # Allow XLA to fuse the slice/flatten/bf16-cast into the input DMA.
            allow_input_fusion=[True, False, False, False, False, False, False],
        ),
        cost_estimate=pl.CostEstimate(flops=flops, transcendentals=0,
                                      bytes_accessed=bytes_accessed),
    )(x2d, w1p, b1p, w2p, b2p, w3p, b3p)

    return out.reshape(B, 1, out_dim)


# --------------------------- parameter creation -------------------------------

def init_params(key, input_size, hidden_sizes, output_size):
    sizes = [input_size] + list(hidden_sizes) + [output_size]
    params = []
    for i in range(len(sizes) - 1):
        key, kw, kb = jax.random.split(key, 3)
        bound = 1.0 / jnp.sqrt(sizes[i])
        w = jax.random.uniform(kw, (sizes[i], sizes[i + 1]),
                               minval=-bound, maxval=bound, dtype=jnp.float32)
        b = jax.random.uniform(kb, (sizes[i + 1],),
                               minval=-bound, maxval=bound, dtype=jnp.float32)
        params += [w, b]
    return tuple(params)


# ---------------------------------- main --------------------------------------

if __name__ == "__main__":
    batch = 2
    state_dim, control_dim = 4, 2
    history_len = 7                       # -> history_len + 1 = 8 timesteps
    feature_dim = 8                       # extra features get sliced away
    hidden_sizes = (32, 32)
    output_dim = 4

    key = jax.random.PRNGKey(0)
    kx, kp = jax.random.split(key)
    x = jax.random.normal(kx, (batch, history_len + 1, feature_dim),
                          dtype=jnp.float32)

    input_size = (state_dim + control_dim) * (history_len + 1)
    params = init_params(kp, input_size, hidden_sizes, output_dim)

    # One-time weight prep; in real use these stay resident on device.
    prepped = prepare_params(params)

    out = jax.block_until_ready(
        mlp_time_embed_encoder(x, prepped,
                               state_dim=state_dim, control_dim=control_dim))

    # References.
    sc = state_dim + control_dim
    x_flat = x[:, :, :sc].reshape(batch, -1)
    w1, b1, w2, b2, w3, b3 = params

    # (a) bf16-matched reference (same numerics as the kernel).
    bf = jnp.bfloat16
    h = jnp.dot(x_flat.astype(bf), w1.astype(bf),
                preferred_element_type=jnp.float32) + b1
    h = jnp.maximum(h, 0.0)
    h = jnp.dot(h.astype(bf), w2.astype(bf),
                preferred_element_type=jnp.float32) + b2
    h = jnp.maximum(h, 0.0)
    ref_bf = (jnp.dot(h.astype(bf), w3.astype(bf),
                      preferred_element_type=jnp.float32)
              + b3).reshape(batch, 1, output_dim)

    # (b) pure-f32 reference (module semantics).
    ref32 = jnp.maximum(x_flat @ w1 + b1, 0.0)
    ref32 = jnp.maximum(ref32 @ w2 + b2, 0.0)
    ref32 = (ref32 @ w3 + b3).reshape(batch, 1, output_dim)

    assert out.shape == (batch, 1, output_dim), out.shape
    assert jnp.allclose(out, ref_bf, atol=1e-2, rtol=1e-2), \
        float(jnp.max(jnp.abs(out - ref_bf)))
    assert jnp.allclose(out, ref32, atol=5e-2, rtol=5e-2), \
        float(jnp.max(jnp.abs(out - ref32)))

    print("KERNEL_OK")
</pallas_src>

<mosaic_0001>
module attributes {stable_mosaic.version = 11 : i64} {
  func.func @_mlp_kernel(%arg0: i32, %arg1: memref<8x48xbf16, #tpu.memory_space<vmem>>, %arg2: memref<48x32xbf16, #tpu.memory_space<vmem>>, %arg3: memref<1x32xf32, #tpu.memory_space<vmem>>, %arg4: memref<32x32xbf16, #tpu.memory_space<vmem>>, %arg5: memref<1x32xf32, #tpu.memory_space<vmem>>, %arg6: memref<32x4xbf16, #tpu.memory_space<vmem>>, %arg7: memref<1x4xf32, #tpu.memory_space<vmem>>, %arg8: memref<8x4xf32, #tpu.memory_space<vmem>>) attributes {dimension_semantics = [#tpu.dimension_semantics<parallel>], iteration_bounds = array<i64: 1>, scalar_prefetch = 0 : i64, scratch_operands = 0 : i64, tpu.core_type = #tpu.core_type<tc>, window_params = [{transform_indices = @transform_0, window_bounds = array<i64: 8, 48>}, {pipeline_mode = #tpu.pipeline_mode<synchronous>, transform_indices = @transform_1, window_bounds = array<i64: 48, 32>}, {pipeline_mode = #tpu.pipeline_mode<synchronous>, transform_indices = @transform_2, window_bounds = array<i64: 1, 32>}, {pipeline_mode = #tpu.pipeline_mode<synchronous>, transform_indices = @transform_3, window_bounds = array<i64: 32, 32>}, {pipeline_mode = #tpu.pipeline_mode<synchronous>, transform_indices = @transform_4, window_bounds = array<i64: 1, 32>}, {pipeline_mode = #tpu.pipeline_mode<synchronous>, transform_indices = @transform_5, window_bounds = array<i64: 32, 4>}, {pipeline_mode = #tpu.pipeline_mode<synchronous>, transform_indices = @transform_6, window_bounds = array<i64: 1, 4>}, {transform_indices = @transform_7, window_bounds = array<i64: 8, 4>}]} {
    %c0 = arith.constant 0 : index
    %c0_0 = arith.constant 0 : index
    %0 = vector.load %arg1[%c0, %c0_0] : memref<8x48xbf16, #tpu.memory_space<vmem>>, vector<8x48xbf16>
    %c0_1 = arith.constant 0 : index
    %c0_2 = arith.constant 0 : index
    %1 = vector.load %arg2[%c0_1, %c0_2] : memref<48x32xbf16, #tpu.memory_space<vmem>>, vector<48x32xbf16>
    %cst = arith.constant dense<0.000000e+00> : vector<8x32xf32>
    %2 = tpu.matmul %0, %1, %cst {dimension_numbers = #tpu.dot_dimension_numbers<[1], [0], [0], [1], [0, 0, 1, 1], [], []>} : vector<8x48xbf16>, vector<48x32xbf16>, vector<8x32xf32> -> vector<8x32xf32>
    %c0_3 = arith.constant 0 : index
    %c0_4 = arith.constant 0 : index
    %3 = vector.load %arg3[%c0_3, %c0_4] : memref<1x32xf32, #tpu.memory_space<vmem>>, vector<1x32xf32>
    %4 = vector.broadcast %3 : vector<1x32xf32> to vector<8x32xf32>
    %5 = arith.addf %2, %4 : vector<8x32xf32>
    %cst_5 = arith.constant 0.000000e+00 : f32
    %6 = vector.broadcast %cst_5 : f32 to vector<8x32xf32>
    %7 = arith.maximumf %5, %6 : vector<8x32xf32>
    %8 = arith.truncf %7 : vector<8x32xf32> to vector<8x32xbf16>
    %c0_6 = arith.constant 0 : index
    %c0_7 = arith.constant 0 : index
    %9 = vector.load %arg4[%c0_6, %c0_7] : memref<32x32xbf16, #tpu.memory_space<vmem>>, vector<32x32xbf16>
    %cst_8 = arith.constant dense<0.000000e+00> : vector<8x32xf32>
    %10 = tpu.matmul %8, %9, %cst_8 {dimension_numbers = #tpu.dot_dimension_numbers<[1], [0], [0], [1], [0, 0, 1, 1], [], []>} : vector<8x32xbf16>, vector<32x32xbf16>, vector<8x32xf32> -> vector<8x32xf32>
    %c0_9 = arith.constant 0 : index
    %c0_10 = arith.constant 0 : index
    %11 = vector.load %arg5[%c0_9, %c0_10] : memref<1x32xf32, #tpu.memory_space<vmem>>, vector<1x32xf32>
    %12 = vector.broadcast %11 : vector<1x32xf32> to vector<8x32xf32>
    %13 = arith.addf %10, %12 : vector<8x32xf32>
    %cst_11 = arith.constant 0.000000e+00 : f32
    %14 = vector.broadcast %cst_11 : f32 to vector<8x32xf32>
    %15 = arith.maximumf %13, %14 : vector<8x32xf32>
    %16 = arith.truncf %15 : vector<8x32xf32> to vector<8x32xbf16>
    %c0_12 = arith.constant 0 : index
    %c0_13 = arith.constant 0 : index
    %17 = vector.load %arg6[%c0_12, %c0_13] : memref<32x4xbf16, #tpu.memory_space<vmem>>, vector<32x4xbf16>
    %cst_14 = arith.constant dense<0.000000e+00> : vector<8x4xf32>
    %18 = tpu.matmul %16, %17, %cst_14 {dimension_numbers = #tpu.dot_dimension_numbers<[1], [0], [0], [1], [0, 0, 1, 1], [], []>} : vector<8x32xbf16>, vector<32x4xbf16>, vector<8x4xf32> -> vector<8x4xf32>
    %c0_15 = arith.constant 0 : index
    %c0_16 = arith.constant 0 : index
    %19 = vector.load %arg7[%c0_15, %c0_16] : memref<1x4xf32, #tpu.memory_space<vmem>>, vector<1x4xf32>
    %20 = vector.broadcast %19 : vector<1x4xf32> to vector<8x4xf32>
    %21 = arith.addf %18, %20 : vector<8x4xf32>
    %c0_17 = arith.constant 0 : index
    %c0_18 = arith.constant 0 : index
    %22 = vector.load %arg8[%c0_17, %c0_18] : memref<8x4xf32, #tpu.memory_space<vmem>>, vector<8x4xf32>
    tpu.vector_store %arg8[%c0_17, %c0_18], %21 {strides = array<i32>} : memref<8x4xf32, #tpu.memory_space<vmem>>, vector<8x4xf32>,
    return
  }
  func.func @transform_0(%arg0: i32) -> (i32, i32) {
    %c0_i32 = arith.constant 0 : i32
    %c0_i32_0 = arith.constant 0 : i32
    return %arg0, %c0_i32 : i32, i32
  }
  func.func @transform_1(%arg0: i32) -> (i32, i32) {
    %c0_i32 = arith.constant 0 : i32
    %c0_i32_0 = arith.constant 0 : i32
    %c0_i32_1 = arith.constant 0 : i32
    return %c0_i32, %c0_i32_0 : i32, i32
  }
  func.func @transform_2(%arg0: i32) -> (i32, i32) {
    %c0_i32 = arith.constant 0 : i32
    %c0_i32_0 = arith.constant 0 : i32
    %c0_i32_1 = arith.constant 0 : i32
    return %c0_i32, %c0_i32_0 : i32, i32
  }
  func.func @transform_3(%arg0: i32) -> (i32, i32) {
    %c0_i32 = arith.constant 0 : i32
    %c0_i32_0 = arith.constant 0 : i32
    %c0_i32_1 = arith.constant 0 : i32
    return %c0_i32, %c0_i32_0 : i32, i32
  }
  func.func @transform_4(%arg0: i32) -> (i32, i32) {
    %c0_i32 = arith.constant 0 : i32
    %c0_i32_0 = arith.constant 0 : i32
    %c0_i32_1 = arith.constant 0 : i32
    return %c0_i32, %c0_i32_0 : i32, i32
  }
  func.func @transform_5(%arg0: i32) -> (i32, i32) {
    %c0_i32 = arith.constant 0 : i32
    %c0_i32_0 = arith.constant 0 : i32
    %c0_i32_1 = arith.constant 0 : i32
    return %c0_i32, %c0_i32_0 : i32, i32
  }
  func.func @transform_6(%arg0: i32) -> (i32, i32) {
    %c0_i32 = arith.constant 0 : i32
    %c0_i32_0 = arith.constant 0 : i32
    %c0_i32_1 = arith.constant 0 : i32
    return %c0_i32, %c0_i32_0 : i32, i32
  }
  func.func @transform_7(%arg0: i32) -> (i32, i32) {
    %c0_i32 = arith.constant 0 : i32
    %c0_i32_0 = arith.constant 0 : i32
    return %arg0, %c0_i32 : i32, i32
  }
}

</mosaic_0001>

<llo_original>
// kernel: mlp_time_embed_encoder.1
$region0: #{mlp_time_embed_encoder.1}
  #allocation0 [shape = 'u32[]', space=smem, size = 0x4, offset = 0x4, fixed_abs, tag = 'smem constant byte address 0x4 - core index']
  #allocation1 [shape = 'u32[144,128]{1,0:T(1,128)}', space=vmem, size = 0x12000, scoped, tag = 'internal scratch']
  %s0 = inlined_call_operand.vmem [shape: bf16[2,48], index: 0, kind: input, shape index: {}]
  %s1 = inlined_call_operand.vmem [shape: bf16[48,32], index: 1, kind: input, shape index: {}]
  %s2 = inlined_call_operand.vmem [shape: f32[1,32], index: 2, kind: input, shape index: {}]
  %s3 = inlined_call_operand.vmem [shape: bf16[32,32], index: 3, kind: input, shape index: {}]
  %s4 = inlined_call_operand.vmem [shape: f32[1,32], index: 4, kind: input, shape index: {}]
  %s5 = inlined_call_operand.vmem [shape: bf16[32,4], index: 5, kind: input, shape index: {}]
  %s6 = inlined_call_operand.vmem [shape: f32[1,4], index: 6, kind: input, shape index: {}]
  %s7 = inlined_call_operand.hbm [shape: f32[2,4], index: 7, kind: output, shape index: {}]
  %s8 = sld [smem:[#allocation0]]
  $region38: #{mlp_time_embed_encoder.1} parent=0
    _
  %s10 = ssub.s32 1, %s8
  %s11 = scalar_select 0, %s10, %s8
  $region1: #{mlp_time_embed_encoder.1} parent=0
    #allocation2 [shape = 'u8[4096]{0}', space=vmem, size = 0x1000, scoped, tag = 'output window, operand 0, single buffered']
    #allocation3 [shape = 's32[1]{0}', space=sflag, size = 0x4, scoped, tag = 'scoped memory for mlp_time_embed_encoder.1']
    %12 = vsyncpa [#allocation3], 0
    // Predicated region
    $region2: #{mlp_time_embed_encoder.1} parent=1 // pred_check
      _
    $region3: #{mlp_time_embed_encoder.1} parent=1 // pred_check_branch
      %14 = sbr.rel (0) target = $region5
    $region4: #{mlp_time_embed_encoder.1} parent=1 // pred_region
      _
    $region5: #{mlp_time_embed_encoder.1} parent=1 // pred_fallthru
      _
    // Predicated region
    $region6: #{mlp_time_embed_encoder.1} parent=1 // pred_check
      _
    $region7: #{mlp_time_embed_encoder.1} parent=1 // pred_check_branch
      %16 = sbr.rel (0) target = $region9
    $region8: #{mlp_time_embed_encoder.1} parent=1 // pred_region
      _
    $region9: #{mlp_time_embed_encoder.1} parent=1 // pred_fallthru
      _
    // Predicated region
    $region10: #{mlp_time_embed_encoder.1} parent=1 // pred_check
      _
    $region11: #{mlp_time_embed_encoder.1} parent=1 // pred_check_branch
      %18 = sbr.rel (0) target = $region13
    $region12: #{mlp_time_embed_encoder.1} parent=1 // pred_region
      _
    $region13: #{mlp_time_embed_encoder.1} parent=1 // pred_fallthru
      _
    // Predicated region
    $region14: #{mlp_time_embed_encoder.1} parent=1 // pred_check
      _
    $region15: #{mlp_time_embed_encoder.1} parent=1 // pred_check_branch
      %20 = sbr.rel (0) target = $region17
    $region16: #{mlp_time_embed_encoder.1} parent=1 // pred_region
      _
    $region17: #{mlp_time_embed_encoder.1} parent=1 // pred_fallthru
      _
    // Predicated region
    $region18: #{mlp_time_embed_encoder.1} parent=1 // pred_check
      _
    $region19: #{mlp_time_embed_encoder.1} parent=1 // pred_check_branch
      %22 = sbr.rel (0) target = $region21
    $region20: #{mlp_time_embed_encoder.1} parent=1 // pred_region
      _
    $region21: #{mlp_time_embed_encoder.1} parent=1 // pred_fallthru
      _
    // Predicated region
    $region22: #{mlp_time_embed_encoder.1} parent=1 // pred_check
      _
    $region23: #{mlp_time_embed_encoder.1} parent=1 // pred_check_branch
      %24 = sbr.rel (0) target = $region25
    $region24: #{mlp_time_embed_encoder.1} parent=1 // pred_region
      _
    $region25: #{mlp_time_embed_encoder.1} parent=1 // pred_fallthru
      _
    // Predicated region
    $region26: #{mlp_time_embed_encoder.1} parent=1 // pred_check
      _
    $region27: #{mlp_time_embed_encoder.1} parent=1 // pred_check_branch
      %26 = sbr.rel (0) target = $region29
    $region28: #{mlp_time_embed_encoder.1} parent=1 // pred_region
      _
    $region29: #{mlp_time_embed_encoder.1} parent=1 // pred_fallthru
      _
    %v28 = vld [vmem:[%s0] sm:$0x1]
    %v29 = vld [vmem:[%s0 + $0x1] sm:$0x1]
    %v30 = vld [vmem:[%s0 + $0x2] sm:$0x1]
    %v31 = vld [vmem:[%s0 + $0x3] sm:$0x1]
    %v32 = vld [vmem:[%s1] sm:$0xf]
    %v33 = vld [vmem:[%s1 + $0x4] sm:$0xf]
    %v34 = vld [vmem:[%s1 + $0x8] sm:$0xf]
    %v35 = vld [vmem:[%s1 + $0xc] sm:$0xf]
    %v36 = vld [vmem:[%s1 + $0x10] sm:$0xf]
    %v37 = vld [vmem:[%s1 + $0x14] sm:$0xf]
    %v38 = vld [vmem:[%s2] sm:$0x1]
    %v40 = vlaneseq
    %v41 = vshrl.u32 %v40, 7
    %v42 = vsub.s32 0, %v41
    %v43 = vrot.slane %v38, %v42
    %v49 = vcombine.low %v28, %v29
    %v50 = vcombine.low %v30, %v31
    %v52 = vunpack.c.l.s4 1966171168
    %v53 = vunpack.c.0.s8 %v52
    %v54 = vlaneseq
    %v55 = vshrl.u32 %v54, 7
    %v56 = vsub.s32 %v53, %v55
    %v57 = vrot.slane %v49, %v56
    %v59 = vunpack.c.l.s4 1966171168
    %v60 = vunpack.c.0.s8 %v59
    %v61 = vlaneseq
    %v62 = vshrl.u32 %v61, 7
    %v63 = vsub.s32 %v60, %v62
    %v64 = vrot.slane %v50, %v63
    %v65 = vcombine.low %v57, %v64
    %v67 = vunpack.c.l.s4 1966171168
    %v68 = vunpack.c.0.s8 %v67
    %v69 = vlaneseq
    %v70 = vshrl.u32 %v69, 7
    %v71 = vsub.s32 %v68, %v70
    %v72 = vrot.slane %v65, %v71
    %v79 = vunpack.c.l.b16 %v32
    %v80 = vunpack.c.l.b16 %v33
    %v81 = vunpack.c.l.b16 %v34
    %v82 = vunpack.c.l.b16 %v35
    %v83 = vunpack.c.l.b16 %v36
    %v84 = vunpack.c.l.b16 %v37
    %v85 = vpack.c.b16 %v80, %v79
    %v86 = vpack.c.b16 %v82, %v81
    %v87 = vpack.c.b16 %v84, %v83
    %vm91 = vcmask 392192
    %v93 = vsel %vm91, %v72, 0
    %95 = vmatprep.subr.bf16.mxu0 0
    %96 = vmatpush1.bf16.msra.mxu0 %v85
    %97 = vmatprep.subr.bf16.mxu0 0
    %98 = vmatpush1.bf16.msra.mxu0 %v86
    %99 = vmatprep.subr.bf16.mxu0 0
    %100 = vmatpush1.bf16.msra.mxu0 %v87
    %101 = vmatprep.subr.bf16.mxu0 0
    %102 = vmatpush1.bf16.msra.mxu0 0
    %103 = vmatprep.subr.bf16.mxu0 0
    %104 = vmatpush1.bf16.msra.mxu0 0
    %105 = vmatprep.subr.bf16.mxu0 0
    %106 = vmatpush1.bf16.msra.mxu0 0
    %107 = vmatprep.subr.bf16.mxu0 0
    %108 = vmatpush1.bf16.msra.mxu0 0
    %109 = vmatprep.subr.bf16.mxu0 0
    %110 = vmatpush1.bf16.msra.mxu0 0
    %111 = vmatprep.subr.bf16.mxu0 0
    %112 = vmatpush1.bf16.msra.mxu0 0
    %113 = vmatprep.subr.bf16.mxu0 0
    %114 = vmatpush1.bf16.msra.mxu0 0
    %115 = vmatprep.subr.bf16.mxu0 0
    %116 = vmatpush1.bf16.msra.mxu0 0
    %117 = vmatprep.subr.bf16.mxu0 0
    %118 = vmatpush1.bf16.msra.mxu0 0
    %119 = vmatprep.subr.bf16.mxu0 0
    %120 = vmatpush1.bf16.msra.mxu0 0
    %121 = vmatprep.subr.bf16.mxu0 0
    %122 = vmatpush1.bf16.msra.mxu0 0
    %123 = vmatprep.subr.bf16.mxu0 0
    %124 = vmatpush1.bf16.msra.mxu0 0
    %125 = vmatprep.subr.bf16.mxu0 0
    %126 = vmatpush1.bf16.msra.mxu0 0
    %127 = vmatprep.mubr.bf16.mxu0 0
    %128 = vmatmul.mubr.bf16.gmra.mrb[0].mxu0 %v93
    %v129 = vpop.f32.mrb[0].mxu0
    %v130 = vadd.f32 %v43, %v129
    %v131 = vpop.f32.mrb[0].mxu0
    %v132 = vpop.f32.mrb[0].mxu0
    %v133 = vpop.f32.mrb[0].mxu0
    %134 = vdwg.mxu0
    %v135 = vmax.f32 %v130, 0.0
    %v136 = vpack.c.bf16 %v135, %v135
    %v137 = vld [vmem:[%s3] sm:$0xf]
    %v138 = vld [vmem:[%s3 + $0x4] sm:$0xf]
    %v139 = vld [vmem:[%s3 + $0x8] sm:$0xf]
    %v140 = vld [vmem:[%s3 + $0xc] sm:$0xf]
    %v141 = vld [vmem:[%s4] sm:$0x1]
    %v143 = vlaneseq
    %v144 = vshrl.u32 %v143, 7
    %v145 = vsub.s32 0, %v144
    %v146 = vrot.slane %v141, %v145
    %v152 = vunpack.c.l.b16 %v137
    %v153 = vunpack.c.l.b16 %v138
    %v154 = vunpack.c.l.b16 %v139
    %v155 = vunpack.c.l.b16 %v140
    %v156 = vpack.c.b16 %v153, %v152
    %v157 = vpack.c.b16 %v155, %v154
    %vm160 = vcmask 261120
    %v162 = vsel %vm160, %v136, 0
    %164 = vmatprep.subr.bf16.mxu0 0
    %165 = vmatpush1.bf16.msra.mxu0 %v156
    %166 = vmatprep.subr.bf16.mxu0 0
    %167 = vmatpush1.bf16.msra.mxu0 %v157
    %168 = vmatprep.subr.bf16.mxu0 0
    %169 = vmatpush1.bf16.msra.mxu0 0
    %170 = vmatprep.subr.bf16.mxu0 0
    %171 = vmatpush1.bf16.msra.mxu0 0
    %172 = vmatprep.subr.bf16.mxu0 0
    %173 = vmatpush1.bf16.msra.mxu0 0
    %174 = vmatprep.subr.bf16.mxu0 0
    %175 = vmatpush1.bf16.msra.mxu0 0
    %176 = vmatprep.subr.bf16.mxu0 0
    %177 = vmatpush1.bf16.msra.mxu0 0
    %178 = vmatprep.subr.bf16.mxu0 0
    %179 = vmatpush1.bf16.msra.mxu0 0
    %180 = vmatprep.subr.bf16.mxu0 0
    %181 = vmatpush1.bf16.msra.mxu0 0
    %182 = vmatprep.subr.bf16.mxu0 0
    %183 = vmatpush1.bf16.msra.mxu0 0
    %184 = vmatprep.subr.bf16.mxu0 0
    %185 = vmatpush1.bf16.msra.mxu0 0
    %186 = vmatprep.subr.bf16.mxu0 0
    %187 = vmatpush1.bf16.msra.mxu0 0
    %188 = vmatprep.subr.bf16.mxu0 0
    %189 = vmatpush1.bf16.msra.mxu0 0
    %190 = vmatprep.subr.bf16.mxu0 0
    %191 = vmatpush1.bf16.msra.mxu0 0
    %192 = vmatprep.subr.bf16.mxu0 0
    %193 = vmatpush1.bf16.msra.mxu0 0
    %194 = vmatprep.subr.bf16.mxu0 0
    %195 = vmatpush1.bf16.msra.mxu0 0
    %196 = vmatprep.mubr.bf16.mxu0 0
    %197 = vmatmul.mubr.bf16.gmra.mrb[0].mxu0 %v162
    %v198 = vpop.f32.mrb[0].mxu0
    %v199 = vadd.f32 %v146, %v198
    %v200 = vpop.f32.mrb[0].mxu0
    %v201 = vpop.f32.mrb[0].mxu0
    %v202 = vpop.f32.mrb[0].mxu0
    %203 = vdwg.mxu0
    %v204 = vmax.f32 %v199, 0.0
    %v205 = vpack.c.bf16 %v204, %v204
    %v206 = vld [vmem:[%s5] sm:$0xf]
    %v207 = vld [vmem:[%s5 + $0x4] sm:$0xf]
    %v208 = vld [vmem:[%s5 + $0x8] sm:$0xf]
    %v209 = vld [vmem:[%s5 + $0xc] sm:$0xf]
    %v210 = vld [vmem:[%s6] sm:$0x1]
    %v212 = vlaneseq
    %v213 = vshrl.u32 %v212, 7
    %v214 = vsub.s32 0, %v213
    %v215 = vrot.slane %v210, %v214
    %v221 = vunpack.c.l.b16 %v206
    %v222 = vunpack.c.l.b16 %v207
    %v223 = vunpack.c.l.b16 %v208
    %v224 = vunpack.c.l.b16 %v209
    %v225 = vpack.c.b16 %v222, %v221
    %v226 = vpack.c.b16 %v224, %v223
    %v230 = vsel %vm160, %v205, 0
    %232 = vmatprep.subr.bf16.mxu0 0
    %233 = vmatpush1.bf16.msra.mxu0 %v225
    %234 = vmatprep.subr.bf16.mxu0 0
    %235 = vmatpush1.bf16.msra.mxu0 %v226
    %236 = vmatprep.subr.bf16.mxu0 0
    %237 = vmatpush1.bf16.msra.mxu0 0
    %238 = vmatprep.subr.bf16.mxu0 0
    %239 = vmatpush1.bf16.msra.mxu0 0
    %240 = vmatprep.subr.bf16.mxu0 0
    %241 = vmatpush1.bf16.msra.mxu0 0
    %242 = vmatprep.subr.bf16.mxu0 0
    %243 = vmatpush1.bf16.msra.mxu0 0
    %244 = vmatprep.subr.bf16.mxu0 0
    %245 = vmatpush1.bf16.msra.mxu0 0
    %246 = vmatprep.subr.bf16.mxu0 0
    %247 = vmatpush1.bf16.msra.mxu0 0
    %248 = vmatprep.subr.bf16.mxu0 0
    %249 = vmatpush1.bf16.msra.mxu0 0
    %250 = vmatprep.subr.bf16.mxu0 0
    %251 = vmatpush1.bf16.msra.mxu0 0
    %252 = vmatprep.subr.bf16.mxu0 0
    %253 = vmatpush1.bf16.msra.mxu0 0
    %254 = vmatprep.subr.bf16.mxu0 0
    %255 = vmatpush1.bf16.msra.mxu0 0
    %256 = vmatprep.subr.bf16.mxu0 0
    %257 = vmatpush1.bf16.msra.mxu0 0
    %258 = vmatprep.subr.bf16.mxu0 0
    %259 = vmatpush1.bf16.msra.mxu0 0
    %260 = vmatprep.subr.bf16.mxu0 0
    %261 = vmatpush1.bf16.msra.mxu0 0
    %262 = vmatprep.subr.bf16.mxu0 0
    %263 = vmatpush1.bf16.msra.mxu0 0
    %264 = vmatprep.mubr.bf16.mxu0 0
    %265 = vmatmul.mubr.bf16.gmra.mrb[0].mxu0 %v230
    %v266 = vpop.f32.mrb[0].mxu0
    %v267 = vadd.f32 %v215, %v266
    %v268 = vpop.f32.mrb[0].mxu0
    %v269 = vpop.f32.mrb[0].mxu0
    %v270 = vpop.f32.mrb[0].mxu0
    %271 = vdwg.mxu0
    %vm272 = vcmask 31744
    %273 = vst.msk [vmem:[#allocation2] sm:$0xff] %vm272, %v267
    // Predicated region
    $region30: #{mlp_time_embed_encoder.1} parent=1 // pred_check
      _
    $region31: #{mlp_time_embed_encoder.1} parent=1 // pred_check_branch
      %275 = sbr.rel (0) target = $region33
    $region32: #{mlp_time_embed_encoder.1} parent=1 // pred_region
      %s277 = ssub.s32 128, 32
      %278 = vsyncadd [#allocation3], %s277
      %s279 = sshll.u32 [#allocation2], 4
      %s280 = int_to_ptr.vmem [resolvable:$true] %s279
      %285 = dma.vmem_to_hbm [thread:$0]  %s280, 32, %s7, [#allocation3], 32, 32, 2
    $region33: #{mlp_time_embed_encoder.1} parent=1 // pred_fallthru
      _
    // Predicated region
    $region34: #{mlp_time_embed_encoder.1} parent=1 // pred_check
      _
    $region35: #{mlp_time_embed_encoder.1} parent=1 // pred_check_branch
      %287 = sbr.rel (0) target = $region37
    $region36: #{mlp_time_embed_encoder.1} parent=1 // pred_region
      %288 = dma.done [#allocation3], 128
    $region37: #{mlp_time_embed_encoder.1} parent=1 // pred_fallthru
      _
    %289 = vsyncpa [#allocation3], 1

</llo_original>
